<compile_context>
chip_gen: v7x
topology: tpu7x:2x2x1
jax: 0.10.0
libtpu: 0.0.40
codegen_flags: <defaults>
</compile_context>

<pallas_src>
import jax
import jax.numpy as jnp
from jax.experimental import pallas as pl
from jax.experimental.pallas import tpu as pltpu


def lstm_kernel(x_ref, wih_ref, whh_ref, b_ref, wfc_ref, bfc_ref, out_ref):
    # x_ref  : (T, Bp, I)  time-major input (batch padded to a sublane multiple)
    # wih_ref: (I, 4H)     W_ih^T
    # whh_ref: (H, 4H)     W_hh^T
    # b_ref  : (1, 4H)     b_ih + b_hh
    # wfc_ref: (1, H)      fc weight row
    # bfc_ref: (1, 1)      fc bias
    # out_ref: (Bp, 1)
    T, B, I = x_ref.shape
    H = whh_ref.shape[0]

    whh = whh_ref[...]
    wfc = wfc_ref[...]

    # ---- Hoisted input projection: single matmul for all timesteps ----------------
    x2d = x_ref[...].reshape(T * B, I)                       # (T*B, I)
    gates_x = (
        jnp.dot(x2d, wih_ref[...], preferred_element_type=jnp.float32) + b_ref[...]
    )                                                        # (T*B, 4H)

    h = jnp.zeros((B, H), jnp.float32)
    c = jnp.zeros((B, H), jnp.float32)

    # ---- Recurrence: fully unrolled over static T ----------------------------------
    for t in range(T):
        # Per-step work is just one (B, H) x (H, 4H) matmul + VPU/EUP elementwise.
        gates = gates_x[t * B:(t + 1) * B, :] + jnp.dot(
            h, whh, preferred_element_type=jnp.float32
        )                                                    # (B, 4H), order i, f, g, o

        # One full-width sigmoid (all 4H lanes), then tanh only on the g slice.
        sg = jax.nn.sigmoid(gates)
        i_g = sg[:, 0 * H:1 * H]
        f_g = sg[:, 1 * H:2 * H]
        o_g = sg[:, 3 * H:4 * H]
        g_g = jnp.tanh(gates[:, 2 * H:3 * H])

        c = f_g * c + i_g * g_g
        h = o_g * jnp.tanh(c)

    # ---- output[:, -1] -> ReLU -> Linear(H, 1) as VPU mul + lane reduction ---------
    h_relu = jnp.maximum(h, 0.0)
    out_ref[...] = (
        jnp.sum(h_relu * wfc, axis=-1, keepdims=True) + bfc_ref[...]
    )


def basic_lstm_forward(x, params):
    """x: (B, T, I) float32 (batch_first, like the PyTorch module). Returns (B, 1)."""
    B, T, I = x.shape
    w_ih_t, w_hh_t, b_sum, w_fc_row, b_fc = params

    # Pad batch to a full f32 sublane tile (8 rows): same instruction count, filled vregs.
    Bp = max(8, ((B + 7) // 8) * 8)
    if Bp != B:
        x = jnp.pad(x, ((0, Bp - B), (0, 0), (0, 0)))

    x_tm = jnp.transpose(x, (1, 0, 2))  # (T, Bp, I) time-major for the kernel

    vmem = pl.BlockSpec(memory_space=pltpu.MemorySpace.VMEM)
    out = pl.pallas_call(
        lstm_kernel,
        out_shape=jax.ShapeDtypeStruct((Bp, 1), jnp.float32),
        in_specs=[vmem, vmem, vmem, vmem, vmem, vmem],
        out_specs=vmem,
    )(x_tm, w_ih_t, w_hh_t, b_sum, w_fc_row, b_fc)

    return out[:B]


def init_params(key, input_size, hidden_size):
    """Deterministic init matching the PyTorch module's shapes.

    nn.LSTM default: uniform(-1/sqrt(H), 1/sqrt(H)) for all weights/biases.
    nn.Linear (fc): xavier_uniform weight, bias filled with 33 (per init_weights).
    """
    k1, k2, k3, k4, k5 = jax.random.split(key, 5)
    H, I = hidden_size, input_size
    bound = 1.0 / jnp.sqrt(jnp.float32(H))

    w_ih = jax.random.uniform(k1, (4 * H, I), jnp.float32, -bound, bound)
    w_hh = jax.random.uniform(k2, (4 * H, H), jnp.float32, -bound, bound)
    b_ih = jax.random.uniform(k3, (4 * H,), jnp.float32, -bound, bound)
    b_hh = jax.random.uniform(k4, (4 * H,), jnp.float32, -bound, bound)

    # fc: Linear(H, 1), xavier_uniform weight, bias = 33.
    xavier_bound = jnp.sqrt(6.0 / (H + 1))
    w_fc = jax.random.uniform(k5, (1, H), jnp.float32, -xavier_bound, xavier_bound)
    b_fc = jnp.full((1,), 33.0, jnp.float32)

    # Kernel-friendly layouts: transposed gate weights, fused bias, fc weight as a row.
    return (
        jnp.transpose(w_ih),                 # (I, 4H)   W_ih^T
        jnp.transpose(w_hh),                 # (H, 4H)   W_hh^T
        (b_ih + b_hh).reshape(1, 4 * H),     # (1, 4H)
        w_fc,                                # (1, H)    fc weight row (for VPU reduce)
        b_fc.reshape(1, 1),                  # (1, 1)
    )


if __name__ == "__main__":
    # Small shapes consistent with the module: batch=2, seq=8, input_size=4, hidden=32.
    B, T, I, H = 2, 8, 4, 32

    key = jax.random.PRNGKey(0)
    k_params, k_x = jax.random.split(key)
    params = init_params(k_params, I, H)
    x = jax.random.normal(k_x, (B, T, I), jnp.float32)

    out = basic_lstm_forward(x, params)
    out = jax.block_until_ready(out)
    assert out.shape == (B, 1), out.shape
    print("KERNEL_OK")
</pallas_src>

<mosaic_0001>
module attributes {stable_mosaic.version = 11 : i64} {
  func.func @lstm_kernel(%arg0: memref<8x8x4xf32, #tpu.memory_space<vmem>>, %arg1: memref<4x128xf32, #tpu.memory_space<vmem>>, %arg2: memref<32x128xf32, #tpu.memory_space<vmem>>, %arg3: memref<1x128xf32, #tpu.memory_space<vmem>>, %arg4: memref<1x32xf32, #tpu.memory_space<vmem>>, %arg5: memref<1x1xf32, #tpu.memory_space<vmem>>, %arg6: memref<8x1xf32, #tpu.memory_space<vmem>>) attributes {dimension_semantics = [], scalar_prefetch = 0 : i64, scratch_operands = 0 : i64, tpu.core_type = #tpu.core_type<tc>} {
    %c0 = arith.constant 0 : index
    %c0_0 = arith.constant 0 : index
    %0 = vector.load %arg2[%c0, %c0_0] : memref<32x128xf32, #tpu.memory_space<vmem>>, vector<32x128xf32>
    %c0_1 = arith.constant 0 : index
    %c0_2 = arith.constant 0 : index
    %1 = vector.load %arg4[%c0_1, %c0_2] : memref<1x32xf32, #tpu.memory_space<vmem>>, vector<1x32xf32>
    %c0_3 = arith.constant 0 : index
    %c0_4 = arith.constant 0 : index
    %c0_5 = arith.constant 0 : index
    %2 = vector.load %arg0[%c0_3, %c0_4, %c0_5] : memref<8x8x4xf32, #tpu.memory_space<vmem>>, vector<8x8x4xf32>
    %3 = vector.shape_cast %2 : vector<8x8x4xf32> to vector<64x4xf32>
    %c0_6 = arith.constant 0 : index
    %c0_7 = arith.constant 0 : index
    %4 = vector.load %arg1[%c0_6, %c0_7] : memref<4x128xf32, #tpu.memory_space<vmem>>, vector<4x128xf32>
    %cst = arith.constant dense<0.000000e+00> : vector<64x128xf32>
    %5 = tpu.matmul %3, %4, %cst {dimension_numbers = #tpu.dot_dimension_numbers<[1], [0], [0], [1], [0, 0, 1, 1], [], []>} : vector<64x4xf32>, vector<4x128xf32>, vector<64x128xf32> -> vector<64x128xf32>
    %c0_8 = arith.constant 0 : index
    %c0_9 = arith.constant 0 : index
    %6 = vector.load %arg3[%c0_8, %c0_9] : memref<1x128xf32, #tpu.memory_space<vmem>>, vector<1x128xf32>
    %7 = vector.broadcast %6 : vector<1x128xf32> to vector<64x128xf32>
    %8 = arith.addf %5, %7 : vector<64x128xf32>
    %cst_10 = arith.constant 0.000000e+00 : f32
    %9 = vector.broadcast %cst_10 : f32 to vector<8x32xf32>
    %cst_11 = arith.constant 0.000000e+00 : f32
    %10 = vector.broadcast %cst_11 : f32 to vector<8x32xf32>
    %11 = vector.extract_strided_slice %8 {offsets = [0, 0], sizes = [8, 128], strides = [1, 1]} : vector<64x128xf32> to vector<8x128xf32>
    %cst_12 = arith.constant dense<0.000000e+00> : vector<8x128xf32>
    %12 = tpu.matmul %9, %0, %cst_12 {dimension_numbers = #tpu.dot_dimension_numbers<[1], [0], [0], [1], [0, 0, 1, 1], [], []>} : vector<8x32xf32>, vector<32x128xf32>, vector<8x128xf32> -> vector<8x128xf32>
    %13 = arith.addf %11, %12 : vector<8x128xf32>
    %14 = arith.negf %13 : vector<8x128xf32>
    %15 = math.exp %14 : vector<8x128xf32>
    %cst_13 = arith.constant 1.000000e+00 : f32
    %16 = vector.broadcast %cst_13 : f32 to vector<8x128xf32>
    %17 = arith.addf %16, %15 : vector<8x128xf32>
    %18 = arith.divf %16, %17 : vector<8x128xf32>
    %19 = vector.extract_strided_slice %18 {offsets = [0, 0], sizes = [8, 32], strides = [1, 1]} : vector<8x128xf32> to vector<8x32xf32>
    %20 = vector.extract_strided_slice %18 {offsets = [0, 32], sizes = [8, 32], strides = [1, 1]} : vector<8x128xf32> to vector<8x32xf32>
    %21 = vector.extract_strided_slice %18 {offsets = [0, 96], sizes = [8, 32], strides = [1, 1]} : vector<8x128xf32> to vector<8x32xf32>
    %22 = vector.extract_strided_slice %13 {offsets = [0, 64], sizes = [8, 32], strides = [1, 1]} : vector<8x128xf32> to vector<8x32xf32>
    %23 = math.tanh %22 : vector<8x32xf32>
    %24 = arith.mulf %20, %10 : vector<8x32xf32>
    %25 = arith.mulf %19, %23 : vector<8x32xf32>
    %26 = arith.addf %24, %25 : vector<8x32xf32>
    %27 = math.tanh %26 : vector<8x32xf32>
    %28 = arith.mulf %21, %27 : vector<8x32xf32>
    %29 = vector.extract_strided_slice %8 {offsets = [8, 0], sizes = [8, 128], strides = [1, 1]} : vector<64x128xf32> to vector<8x128xf32>
    %cst_14 = arith.constant dense<0.000000e+00> : vector<8x128xf32>
    %30 = tpu.matmul %28, %0, %cst_14 {dimension_numbers = #tpu.dot_dimension_numbers<[1], [0], [0], [1], [0, 0, 1, 1], [], []>} : vector<8x32xf32>, vector<32x128xf32>, vector<8x128xf32> -> vector<8x128xf32>
    %31 = arith.addf %29, %30 : vector<8x128xf32>
    %32 = arith.negf %31 : vector<8x128xf32>
    %33 = math.exp %32 : vector<8x128xf32>
    %cst_15 = arith.constant 1.000000e+00 : f32
    %34 = vector.broadcast %cst_15 : f32 to vector<8x128xf32>
    %35 = arith.addf %34, %33 : vector<8x128xf32>
    %36 = arith.divf %34, %35 : vector<8x128xf32>
    %37 = vector.extract_strided_slice %36 {offsets = [0, 0], sizes = [8, 32], strides = [1, 1]} : vector<8x128xf32> to vector<8x32xf32>
    %38 = vector.extract_strided_slice %36 {offsets = [0, 32], sizes = [8, 32], strides = [1, 1]} : vector<8x128xf32> to vector<8x32xf32>
    %39 = vector.extract_strided_slice %36 {offsets = [0, 96], sizes = [8, 32], strides = [1, 1]} : vector<8x128xf32> to vector<8x32xf32>
    %40 = vector.extract_strided_slice %31 {offsets = [0, 64], sizes = [8, 32], strides = [1, 1]} : vector<8x128xf32> to vector<8x32xf32>
    %41 = math.tanh %40 : vector<8x32xf32>
    %42 = arith.mulf %38, %26 : vector<8x32xf32>
    %43 = arith.mulf %37, %41 : vector<8x32xf32>
    %44 = arith.addf %42, %43 : vector<8x32xf32>
    %45 = math.tanh %44 : vector<8x32xf32>
    %46 = arith.mulf %39, %45 : vector<8x32xf32>
    %47 = vector.extract_strided_slice %8 {offsets = [16, 0], sizes = [8, 128], strides = [1, 1]} : vector<64x128xf32> to vector<8x128xf32>
    %cst_16 = arith.constant dense<0.000000e+00> : vector<8x128xf32>
    %48 = tpu.matmul %46, %0, %cst_16 {dimension_numbers = #tpu.dot_dimension_numbers<[1], [0], [0], [1], [0, 0, 1, 1], [], []>} : vector<8x32xf32>, vector<32x128xf32>, vector<8x128xf32> -> vector<8x128xf32>
    %49 = arith.addf %47, %48 : vector<8x128xf32>
    %50 = arith.negf %49 : vector<8x128xf32>
    %51 = math.exp %50 : vector<8x128xf32>
    %cst_17 = arith.constant 1.000000e+00 : f32
    %52 = vector.broadcast %cst_17 : f32 to vector<8x128xf32>
    %53 = arith.addf %52, %51 : vector<8x128xf32>
    %54 = arith.divf %52, %53 : vector<8x128xf32>
    %55 = vector.extract_strided_slice %54 {offsets = [0, 0], sizes = [8, 32], strides = [1, 1]} : vector<8x128xf32> to vector<8x32xf32>
    %56 = vector.extract_strided_slice %54 {offsets = [0, 32], sizes = [8, 32], strides = [1, 1]} : vector<8x128xf32> to vector<8x32xf32>
    %57 = vector.extract_strided_slice %54 {offsets = [0, 96], sizes = [8, 32], strides = [1, 1]} : vector<8x128xf32> to vector<8x32xf32>
    %58 = vector.extract_strided_slice %49 {offsets = [0, 64], sizes = [8, 32], strides = [1, 1]} : vector<8x128xf32> to vector<8x32xf32>
    %59 = math.tanh %58 : vector<8x32xf32>
    %60 = arith.mulf %56, %44 : vector<8x32xf32>
    %61 = arith.mulf %55, %59 : vector<8x32xf32>
    %62 = arith.addf %60, %61 : vector<8x32xf32>
    %63 = math.tanh %62 : vector<8x32xf32>
    %64 = arith.mulf %57, %63 : vector<8x32xf32>
    %65 = vector.extract_strided_slice %8 {offsets = [24, 0], sizes = [8, 128], strides = [1, 1]} : vector<64x128xf32> to vector<8x128xf32>
    %cst_18 = arith.constant dense<0.000000e+00> : vector<8x128xf32>
    %66 = tpu.matmul %64, %0, %cst_18 {dimension_numbers = #tpu.dot_dimension_numbers<[1], [0], [0], [1], [0, 0, 1, 1], [], []>} : vector<8x32xf32>, vector<32x128xf32>, vector<8x128xf32> -> vector<8x128xf32>
    %67 = arith.addf %65, %66 : vector<8x128xf32>
    %68 = arith.negf %67 : vector<8x128xf32>
    %69 = math.exp %68 : vector<8x128xf32>
    %cst_19 = arith.constant 1.000000e+00 : f32
    %70 = vector.broadcast %cst_19 : f32 to vector<8x128xf32>
    %71 = arith.addf %70, %69 : vector<8x128xf32>
    %72 = arith.divf %70, %71 : vector<8x128xf32>
    %73 = vector.extract_strided_slice %72 {offsets = [0, 0], sizes = [8, 32], strides = [1, 1]} : vector<8x128xf32> to vector<8x32xf32>
    %74 = vector.extract_strided_slice %72 {offsets = [0, 32], sizes = [8, 32], strides = [1, 1]} : vector<8x128xf32> to vector<8x32xf32>
    %75 = vector.extract_strided_slice %72 {offsets = [0, 96], sizes = [8, 32], strides = [1, 1]} : vector<8x128xf32> to vector<8x32xf32>
    %76 = vector.extract_strided_slice %67 {offsets = [0, 64], sizes = [8, 32], strides = [1, 1]} : vector<8x128xf32> to vector<8x32xf32>
    %77 = math.tanh %76 : vector<8x32xf32>
    %78 = arith.mulf %74, %62 : vector<8x32xf32>
    %79 = arith.mulf %73, %77 : vector<8x32xf32>
    %80 = arith.addf %78, %79 : vector<8x32xf32>
    %81 = math.tanh %80 : vector<8x32xf32>
    %82 = arith.mulf %75, %81 : vector<8x32xf32>
    %83 = vector.extract_strided_slice %8 {offsets = [32, 0], sizes = [8, 128], strides = [1, 1]} : vector<64x128xf32> to vector<8x128xf32>
    %cst_20 = arith.constant dense<0.000000e+00> : vector<8x128xf32>
    %84 = tpu.matmul %82, %0, %cst_20 {dimension_numbers = #tpu.dot_dimension_numbers<[1], [0], [0], [1], [0, 0, 1, 1], [], []>} : vector<8x32xf32>, vector<32x128xf32>, vector<8x128xf32> -> vector<8x128xf32>
    %85 = arith.addf %83, %84 : vector<8x128xf32>
    %86 = arith.negf %85 : vector<8x128xf32>
    %87 = math.exp %86 : vector<8x128xf32>
    %cst_21 = arith.constant 1.000000e+00 : f32
    %88 = vector.broadcast %cst_21 : f32 to vector<8x128xf32>
    %89 = arith.addf %88, %87 : vector<8x128xf32>
    %90 = arith.divf %88, %89 : vector<8x128xf32>
    %91 = vector.extract_strided_slice %90 {offsets = [0, 0], sizes = [8, 32], strides = [1, 1]} : vector<8x128xf32> to vector<8x32xf32>
    %92 = vector.extract_strided_slice %90 {offsets = [0, 32], sizes = [8, 32], strides = [1, 1]} : vector<8x128xf32> to vector<8x32xf32>
    %93 = vector.extract_strided_slice %90 {offsets = [0, 96], sizes = [8, 32], strides = [1, 1]} : vector<8x128xf32> to vector<8x32xf32>
    %94 = vector.extract_strided_slice %85 {offsets = [0, 64], sizes = [8, 32], strides = [1, 1]} : vector<8x128xf32> to vector<8x32xf32>
    %95 = math.tanh %94 : vector<8x32xf32>
    %96 = arith.mulf %92, %80 : vector<8x32xf32>
    %97 = arith.mulf %91, %95 : vector<8x32xf32>
    %98 = arith.addf %96, %97 : vector<8x32xf32>
    %99 = math.tanh %98 : vector<8x32xf32>
    %100 = arith.mulf %93, %99 : vector<8x32xf32>
    %101 = vector.extract_strided_slice %8 {offsets = [40, 0], sizes = [8, 128], strides = [1, 1]} : vector<64x128xf32> to vector<8x128xf32>
    %cst_22 = arith.constant dense<0.000000e+00> : vector<8x128xf32>
    %102 = tpu.matmul %100, %0, %cst_22 {dimension_numbers = #tpu.dot_dimension_numbers<[1], [0], [0], [1], [0, 0, 1, 1], [], []>} : vector<8x32xf32>, vector<32x128xf32>, vector<8x128xf32> -> vector<8x128xf32>
    %103 = arith.addf %101, %102 : vector<8x128xf32>
    %104 = arith.negf %103 : vector<8x128xf32>
    %105 = math.exp %104 : vector<8x128xf32>
    %cst_23 = arith.constant 1.000000e+00 : f32
    %106 = vector.broadcast %cst_23 : f32 to vector<8x128xf32>
    %107 = arith.addf %106, %105 : vector<8x128xf32>
    %108 = arith.divf %106, %107 : vector<8x128xf32>
    %109 = vector.extract_strided_slice %108 {offsets = [0, 0], sizes = [8, 32], strides = [1, 1]} : vector<8x128xf32> to vector<8x32xf32>
    %110 = vector.extract_strided_slice %108 {offsets = [0, 32], sizes = [8, 32], strides = [1, 1]} : vector<8x128xf32> to vector<8x32xf32>
    %111 = vector.extract_strided_slice %108 {offsets = [0, 96], sizes = [8, 32], strides = [1, 1]} : vector<8x128xf32> to vector<8x32xf32>
    %112 = vector.extract_strided_slice %103 {offsets = [0, 64], sizes = [8, 32], strides = [1, 1]} : vector<8x128xf32> to vector<8x32xf32>
    %113 = math.tanh %112 : vector<8x32xf32>
    %114 = arith.mulf %110, %98 : vector<8x32xf32>
    %115 = arith.mulf %109, %113 : vector<8x32xf32>
    %116 = arith.addf %114, %115 : vector<8x32xf32>
    %117 = math.tanh %116 : vector<8x32xf32>
    %118 = arith.mulf %111, %117 : vector<8x32xf32>
    %119 = vector.extract_strided_slice %8 {offsets = [48, 0], sizes = [8, 128], strides = [1, 1]} : vector<64x128xf32> to vector<8x128xf32>
    %cst_24 = arith.constant dense<0.000000e+00> : vector<8x128xf32>
    %120 = tpu.matmul %118, %0, %cst_24 {dimension_numbers = #tpu.dot_dimension_numbers<[1], [0], [0], [1], [0, 0, 1, 1], [], []>} : vector<8x32xf32>, vector<32x128xf32>, vector<8x128xf32> -> vector<8x128xf32>
    %121 = arith.addf %119, %120 : vector<8x128xf32>
    %122 = arith.negf %121 : vector<8x128xf32>
    %123 = math.exp %122 : vector<8x128xf32>
    %cst_25 = arith.constant 1.000000e+00 : f32
    %124 = vector.broadcast %cst_25 : f32 to vector<8x128xf32>
    %125 = arith.addf %124, %123 : vector<8x128xf32>
    %126 = arith.divf %124, %125 : vector<8x128xf32>
    %127 = vector.extract_strided_slice %126 {offsets = [0, 0], sizes = [8, 32], strides = [1, 1]} : vector<8x128xf32> to vector<8x32xf32>
    %128 = vector.extract_strided_slice %126 {offsets = [0, 32], sizes = [8, 32], strides = [1, 1]} : vector<8x128xf32> to vector<8x32xf32>
    %129 = vector.extract_strided_slice %126 {offsets = [0, 96], sizes = [8, 32], strides = [1, 1]} : vector<8x128xf32> to vector<8x32xf32>
    %130 = vector.extract_strided_slice %121 {offsets = [0, 64], sizes = [8, 32], strides = [1, 1]} : vector<8x128xf32> to vector<8x32xf32>
    %131 = math.tanh %130 : vector<8x32xf32>
    %132 = arith.mulf %128, %116 : vector<8x32xf32>
    %133 = arith.mulf %127, %131 : vector<8x32xf32>
    %134 = arith.addf %132, %133 : vector<8x32xf32>
    %135 = math.tanh %134 : vector<8x32xf32>
    %136 = arith.mulf %129, %135 : vector<8x32xf32>
    %137 = vector.extract_strided_slice %8 {offsets = [56, 0], sizes = [8, 128], strides = [1, 1]} : vector<64x128xf32> to vector<8x128xf32>
    %cst_26 = arith.constant dense<0.000000e+00> : vector<8x128xf32>
    %138 = tpu.matmul %136, %0, %cst_26 {dimension_numbers = #tpu.dot_dimension_numbers<[1], [0], [0], [1], [0, 0, 1, 1], [], []>} : vector<8x32xf32>, vector<32x128xf32>, vector<8x128xf32> -> vector<8x128xf32>
    %139 = arith.addf %137, %138 : vector<8x128xf32>
    %140 = arith.negf %139 : vector<8x128xf32>
    %141 = math.exp %140 : vector<8x128xf32>
    %cst_27 = arith.constant 1.000000e+00 : f32
    %142 = vector.broadcast %cst_27 : f32 to vector<8x128xf32>
    %143 = arith.addf %142, %141 : vector<8x128xf32>
    %144 = arith.divf %142, %143 : vector<8x128xf32>
    %145 = vector.extract_strided_slice %144 {offsets = [0, 0], sizes = [8, 32], strides = [1, 1]} : vector<8x128xf32> to vector<8x32xf32>
    %146 = vector.extract_strided_slice %144 {offsets = [0, 32], sizes = [8, 32], strides = [1, 1]} : vector<8x128xf32> to vector<8x32xf32>
    %147 = vector.extract_strided_slice %144 {offsets = [0, 96], sizes = [8, 32], strides = [1, 1]} : vector<8x128xf32> to vector<8x32xf32>
    %148 = vector.extract_strided_slice %139 {offsets = [0, 64], sizes = [8, 32], strides = [1, 1]} : vector<8x128xf32> to vector<8x32xf32>
    %149 = math.tanh %148 : vector<8x32xf32>
    %150 = arith.mulf %146, %134 : vector<8x32xf32>
    %151 = arith.mulf %145, %149 : vector<8x32xf32>
    %152 = arith.addf %150, %151 : vector<8x32xf32>
    %153 = math.tanh %152 : vector<8x32xf32>
    %154 = arith.mulf %147, %153 : vector<8x32xf32>
    %cst_28 = arith.constant 0.000000e+00 : f32
    %155 = vector.broadcast %cst_28 : f32 to vector<8x32xf32>
    %156 = arith.maximumf %154, %155 : vector<8x32xf32>
    %157 = vector.broadcast %1 : vector<1x32xf32> to vector<8x32xf32>
    %158 = arith.mulf %156, %157 : vector<8x32xf32>
    %cst_29 = arith.constant dense<0.000000e+00> : vector<8xf32>
    %159 = vector.multi_reduction <add>, %158, %cst_29 [1] : vector<8x32xf32> to vector<8xf32>
    %160 = vector.shape_cast %159 : vector<8xf32> to vector<8x1xf32>
    %c0_30 = arith.constant 0 : index
    %c0_31 = arith.constant 0 : index
    %161 = vector.load %arg5[%c0_30, %c0_31] : memref<1x1xf32, #tpu.memory_space<vmem>>, vector<1x1xf32>
    %162 = vector.broadcast %161 : vector<1x1xf32> to vector<8x1xf32>
    %163 = arith.addf %160, %162 : vector<8x1xf32>
    %c0_32 = arith.constant 0 : index
    %c0_33 = arith.constant 0 : index
    %164 = vector.load %arg6[%c0_32, %c0_33] : memref<8x1xf32, #tpu.memory_space<vmem>>, vector<8x1xf32>
    tpu.vector_store %arg6[%c0_32, %c0_33], %163 {strides = array<i32>} : memref<8x1xf32, #tpu.memory_space<vmem>>, vector<8x1xf32>,
    return
  }
}

</mosaic_0001>

<llo_original>
// kernel: tpu_custom_call.1
$region0: #{tpu_custom_call.1}
  #allocation0 [shape = 'u32[]', space=smem, size = 0x4, offset = 0x4, fixed_abs, tag = 'smem constant byte address 0x4 - core index']
  #allocation1 [shape = 'u32[144,128]{1,0:T(1,128)}', space=vmem, size = 0x12000, scoped, tag = 'internal scratch']
  #allocation2 [shape = 'f32[1,1]{1,0:T(1,128)S(1)}', space=vmem, size = 0x200, scoped, tag = 'scoped memory for tpu_custom_call.1']
  %s0 = inlined_call_operand.vmem [shape: f32[8,8,4], index: 0, kind: input, shape index: {}]
  %s1 = inlined_call_operand.vmem [shape: f32[4,128], index: 1, kind: input, shape index: {}]
  %s2 = inlined_call_operand.vmem [shape: f32[32,128], index: 2, kind: input, shape index: {}]
  %s3 = inlined_call_operand.vmem [shape: f32[1,128], index: 3, kind: input, shape index: {}]
  %s4 = inlined_call_operand.vmem [shape: f32[1,32], index: 4, kind: input, shape index: {}]
  %s5 = inlined_call_operand.<no memory space> [shape: f32[1,1], index: 5, kind: input, shape index: {}]
  %s6 = inlined_call_operand.vmem [shape: f32[8,1], index: 6, kind: output, shape index: {}]
  %s7 = sld [smem:[#allocation0]]
  $region34: #{tpu_custom_call.1} parent=0
    _
  %s9 = ssub.s32 1, %s7
  %s10 = scalar_select 0, %s9, %s7
  %v11 = vstv %s5
  %12 = vst [vmem:[#allocation2] sm:$0x1] %v11
  // Predicated region
  $region2: #{tpu_custom_call.1} parent=0 // pred_check
    _
  $region3: #{tpu_custom_call.1} parent=0 // pred_check_branch
    %14 = sbr.rel (0) target = $region5
  $region4: #{tpu_custom_call.1} parent=0 // pred_region
    _
  $region5: #{tpu_custom_call.1} parent=0 // pred_fallthru
    _
  // Predicated region
  $region6: #{tpu_custom_call.1} parent=0 // pred_check
    _
  $region7: #{tpu_custom_call.1} parent=0 // pred_check_branch
    %16 = sbr.rel (0) target = $region9
  $region8: #{tpu_custom_call.1} parent=0 // pred_region
    _
  $region9: #{tpu_custom_call.1} parent=0 // pred_fallthru
    _
  // Predicated region
  $region10: #{tpu_custom_call.1} parent=0 // pred_check
    _
  $region11: #{tpu_custom_call.1} parent=0 // pred_check_branch
    %18 = sbr.rel (0) target = $region13
  $region12: #{tpu_custom_call.1} parent=0 // pred_region
    _
  $region13: #{tpu_custom_call.1} parent=0 // pred_fallthru
    _
  // Predicated region
  $region14: #{tpu_custom_call.1} parent=0 // pred_check
    _
  $region15: #{tpu_custom_call.1} parent=0 // pred_check_branch
    %20 = sbr.rel (0) target = $region17
  $region16: #{tpu_custom_call.1} parent=0 // pred_region
    _
  $region17: #{tpu_custom_call.1} parent=0 // pred_fallthru
    _
  // Predicated region
  $region18: #{tpu_custom_call.1} parent=0 // pred_check
    _
  $region19: #{tpu_custom_call.1} parent=0 // pred_check_branch
    %22 = sbr.rel (0) target = $region21
  $region20: #{tpu_custom_call.1} parent=0 // pred_region
    _
  $region21: #{tpu_custom_call.1} parent=0 // pred_fallthru
    _
  // Predicated region
  $region22: #{tpu_custom_call.1} parent=0 // pred_check
    _
  $region23: #{tpu_custom_call.1} parent=0 // pred_check_branch
    %24 = sbr.rel (0) target = $region25
  $region24: #{tpu_custom_call.1} parent=0 // pred_region
    _
  $region25: #{tpu_custom_call.1} parent=0 // pred_fallthru
    _
  %v25 = vld [vmem:[%s2] sm:$0xff]
  %v26 = vld [vmem:[%s2 + $0x8] sm:$0xff]
  %v27 = vld [vmem:[%s2 + $0x10] sm:$0xff]
  %v28 = vld [vmem:[%s2 + $0x18] sm:$0xff]
  %v29 = vld [vmem:[%s4] sm:$0x1]
  %v30 = vld [vmem:[%s0] sm:$0xff]
  %v31 = vld [vmem:[%s0 + $0x8] sm:$0xff]
  %v32 = vld [vmem:[%s0 + $0x10] sm:$0xff]
  %v33 = vld [vmem:[%s0 + $0x18] sm:$0xff]
  %v34 = vld [vmem:[%s0 + $0x20] sm:$0xff]
  %v35 = vld [vmem:[%s0 + $0x28] sm:$0xff]
  %v36 = vld [vmem:[%s0 + $0x30] sm:$0xff]
  %v37 = vld [vmem:[%s0 + $0x38] sm:$0xff]
  %v38 = vld [vmem:[%s1] sm:$0xf]
  %v39 = vld [vmem:[%s3] sm:$0x1]
  %v41 = vlaneseq
  %v42 = vshrl.u32 %v41, 7
  %v43 = vsub.s32 0, %v42
  %v44 = vrot.slane %v39, %v43
  %vm46 = vcmask 31744
  %v48 = vsel %vm46, %v30, 0
  %v51 = vsel %vm46, %v31, 0
  %v54 = vsel %vm46, %v32, 0
  %v57 = vsel %vm46, %v33, 0
  %v60 = vsel %vm46, %v34, 0
  %v63 = vsel %vm46, %v35, 0
  %v66 = vsel %vm46, %v36, 0
  %v69 = vsel %vm46, %v37, 0
  %vm71 = vcmask 1043456
  %v73 = vsel %vm71, %v38, 0
  %75 = vmatprep.subr.mxu0 0.0
  %76 = vmatpush1.msra.mxu0 %v73
  %77 = vmatprep.subr.mxu0 0.0
  %78 = vmatpush1.msra.mxu0 0.0
  %79 = vmatprep.subr.mxu0 0.0
  %80 = vmatpush1.msra.mxu0 0.0
  %81 = vmatprep.subr.mxu0 0.0
  %82 = vmatpush1.msra.mxu0 0.0
  %83 = vmatprep.subr.mxu0 0.0
  %84 = vmatpush1.msra.mxu0 0.0
  %85 = vmatprep.subr.mxu0 0.0
  %86 = vmatpush1.msra.mxu0 0.0
  %87 = vmatprep.subr.mxu0 0.0
  %88 = vmatpush1.msra.mxu0 0.0
  %89 = vmatprep.subr.mxu0 0.0
  %90 = vmatpush1.msra.mxu0 0.0
  %91 = vmatprep.subr.mxu0 0.0
  %92 = vmatpush1.msra.mxu0 0.0
  %93 = vmatprep.subr.mxu0 0.0
  %94 = vmatpush1.msra.mxu0 0.0
  %95 = vmatprep.subr.mxu0 0.0
  %96 = vmatpush1.msra.mxu0 0.0
  %97 = vmatprep.subr.mxu0 0.0
  %98 = vmatpush1.msra.mxu0 0.0
  %99 = vmatprep.subr.mxu0 0.0
  %100 = vmatpush1.msra.mxu0 0.0
  %101 = vmatprep.subr.mxu0 0.0
  %102 = vmatpush1.msra.mxu0 0.0
  %103 = vmatprep.subr.mxu0 0.0
  %104 = vmatpush1.msra.mxu0 0.0
  %105 = vmatprep.subr.mxu0 0.0
  %106 = vmatpush1.msra.mxu0 0.0
  %107 = vmatprep.subr.mxu0 0.0
  %108 = vmatpush1.msra.mxu0 0.0
  %109 = vmatprep.subr.mxu0 0.0
  %110 = vmatpush1.msra.mxu0 0.0
  %111 = vmatprep.subr.mxu0 0.0
  %112 = vmatpush1.msra.mxu0 0.0
  %113 = vmatprep.subr.mxu0 0.0
  %114 = vmatpush1.msra.mxu0 0.0
  %115 = vmatprep.subr.mxu0 0.0
  %116 = vmatpush1.msra.mxu0 0.0
  %117 = vmatprep.subr.mxu0 0.0
  %118 = vmatpush1.msra.mxu0 0.0
  %119 = vmatprep.subr.mxu0 0.0
  %120 = vmatpush1.msra.mxu0 0.0
  %121 = vmatprep.subr.mxu0 0.0
  %122 = vmatpush1.msra.mxu0 0.0
  %123 = vmatprep.subr.mxu0 0.0
  %124 = vmatpush1.msra.mxu0 0.0
  %125 = vmatprep.subr.mxu0 0.0
  %126 = vmatpush1.msra.mxu0 0.0
  %127 = vmatprep.subr.mxu0 0.0
  %128 = vmatpush1.msra.mxu0 0.0
  %129 = vmatprep.subr.mxu0 0.0
  %130 = vmatpush1.msra.mxu0 0.0
  %131 = vmatprep.subr.mxu0 0.0
  %132 = vmatpush1.msra.mxu0 0.0
  %133 = vmatprep.subr.mxu0 0.0
  %134 = vmatpush1.msra.mxu0 0.0
  %135 = vmatprep.subr.mxu0 0.0
  %136 = vmatpush1.msra.mxu0 0.0
  %137 = vmatprep.subr.mxu0 0.0
  %138 = vmatpush1.msra.mxu0 0.0
  %139 = vmatprep.mubr.f32.mxu0 0.0
  %140 = vmatmul.mubr.f32.gmra.mrb[0].mxu0 %v48
  %v141 = vpop.f32.mrb[0].mxu0
  %v142 = vadd.f32 %v44, %v141
  %v143 = vpop.f32.mrb[0].mxu0
  %144 = vmatprep.mubr.f32.mxu0 0.0
  %145 = vmatmul.mubr.f32.gmra.mrb[0].mxu0 %v51
  %v146 = vpop.f32.mrb[0].mxu0
  %v147 = vadd.f32 %v44, %v146
  %v148 = vpop.f32.mrb[0].mxu0
  %149 = vmatprep.mubr.f32.mxu0 0.0
  %150 = vmatmul.mubr.f32.gmra.mrb[0].mxu0 %v54
  %v151 = vpop.f32.mrb[0].mxu0
  %v152 = vadd.f32 %v44, %v151
  %v153 = vpop.f32.mrb[0].mxu0
  %154 = vmatprep.mubr.f32.mxu0 0.0
  %155 = vmatmul.mubr.f32.gmra.mrb[0].mxu0 %v57
  %v156 = vpop.f32.mrb[0].mxu0
  %v157 = vadd.f32 %v44, %v156
  %v158 = vpop.f32.mrb[0].mxu0
  %159 = vmatprep.mubr.f32.mxu0 0.0
  %160 = vmatmul.mubr.f32.gmra.mrb[0].mxu0 %v60
  %v161 = vpop.f32.mrb[0].mxu0
  %v162 = vadd.f32 %v44, %v161
  %v163 = vpop.f32.mrb[0].mxu0
  %164 = vmatprep.mubr.f32.mxu0 0.0
  %165 = vmatmul.mubr.f32.gmra.mrb[0].mxu0 %v63
  %v166 = vpop.f32.mrb[0].mxu0
  %v167 = vadd.f32 %v44, %v166
  %v168 = vpop.f32.mrb[0].mxu0
  %169 = vmatprep.mubr.f32.mxu0 0.0
  %170 = vmatmul.mubr.f32.gmra.mrb[0].mxu0 %v66
  %v171 = vpop.f32.mrb[0].mxu0
  %v172 = vadd.f32 %v44, %v171
  %v173 = vpop.f32.mrb[0].mxu0
  %174 = vmatprep.mubr.f32.mxu0 0.0
  %175 = vmatmul.mubr.f32.gmra.mrb[0].mxu0 %v69
  %v176 = vpop.f32.mrb[0].mxu0
  %v177 = vadd.f32 %v44, %v176
  %v178 = vpop.f32.mrb[0].mxu0
  %179 = vdwg.mxu0
  %vm180 = vcmask 261120
  %v182 = vsel %vm180, 0.0, 0
  %184 = vmatprep.subr.mxu0 0.0
  %185 = vmatpush1.msra.mxu0 %v25
  %186 = vmatprep.subr.mxu0 0.0
  %187 = vmatpush1.msra.mxu0 %v26
  %188 = vmatprep.subr.mxu0 0.0
  %189 = vmatpush1.msra.mxu0 %v27
  %190 = vmatprep.subr.mxu0 0.0
  %191 = vmatpush1.msra.mxu0 %v28
  %192 = vmatprep.subr.mxu0 0.0
  %193 = vmatpush1.msra.mxu0 0.0
  %194 = vmatprep.subr.mxu0 0.0
  %195 = vmatpush1.msra.mxu0 0.0
  %196 = vmatprep.subr.mxu0 0.0
  %197 = vmatpush1.msra.mxu0 0.0
  %198 = vmatprep.subr.mxu0 0.0
  %199 = vmatpush1.msra.mxu0 0.0
  %200 = vmatprep.subr.mxu0 0.0
  %201 = vmatpush1.msra.mxu0 0.0
  %202 = vmatprep.subr.mxu0 0.0
  %203 = vmatpush1.msra.mxu0 0.0
  %204 = vmatprep.subr.mxu0 0.0
  %205 = vmatpush1.msra.mxu0 0.0
  %206 = vmatprep.subr.mxu0 0.0
  %207 = vmatpush1.msra.mxu0 0.0
  %208 = vmatprep.subr.mxu0 0.0
  %209 = vmatpush1.msra.mxu0 0.0
  %210 = vmatprep.subr.mxu0 0.0
  %211 = vmatpush1.msra.mxu0 0.0
  %212 = vmatprep.subr.mxu0 0.0
  %213 = vmatpush1.msra.mxu0 0.0
  %214 = vmatprep.subr.mxu0 0.0
  %215 = vmatpush1.msra.mxu0 0.0
  %216 = vmatprep.subr.mxu0 0.0
  %217 = vmatpush1.msra.mxu0 0.0
  %218 = vmatprep.subr.mxu0 0.0
  %219 = vmatpush1.msra.mxu0 0.0
  %220 = vmatprep.subr.mxu0 0.0
  %221 = vmatpush1.msra.mxu0 0.0
  %222 = vmatprep.subr.mxu0 0.0
  %223 = vmatpush1.msra.mxu0 0.0
  %224 = vmatprep.subr.mxu0 0.0
  %225 = vmatpush1.msra.mxu0 0.0
  %226 = vmatprep.subr.mxu0 0.0
  %227 = vmatpush1.msra.mxu0 0.0
  %228 = vmatprep.subr.mxu0 0.0
  %229 = vmatpush1.msra.mxu0 0.0
  %230 = vmatprep.subr.mxu0 0.0
  %231 = vmatpush1.msra.mxu0 0.0
  %232 = vmatprep.subr.mxu0 0.0
  %233 = vmatpush1.msra.mxu0 0.0
  %234 = vmatprep.subr.mxu0 0.0
  %235 = vmatpush1.msra.mxu0 0.0
  %236 = vmatprep.subr.mxu0 0.0
  %237 = vmatpush1.msra.mxu0 0.0
  %238 = vmatprep.subr.mxu0 0.0
  %239 = vmatpush1.msra.mxu0 0.0
  %240 = vmatprep.subr.mxu0 0.0
  %241 = vmatpush1.msra.mxu0 0.0
  %242 = vmatprep.subr.mxu0 0.0
  %243 = vmatpush1.msra.mxu0 0.0
  %244 = vmatprep.subr.mxu0 0.0
  %245 = vmatpush1.msra.mxu0 0.0
  %246 = vmatprep.subr.mxu0 0.0
  %247 = vmatpush1.msra.mxu0 0.0
  %248 = vmatprep.mubr.f32.mxu0 0.0
  %249 = vmatmul.mubr.f32.gmra.mrb[0].mxu0 %v182
  %v250 = vpop.f32.mrb[0].mxu0
  %v251 = vadd.f32 0.0, %v250
  %v252 = vpop.f32.mrb[0].mxu0
  %253 = vdwg.mxu0
  %v254 = vadd.f32 %v142, %v251
  %v255 = vxor.u32 %v254, 2147483648
  %v256 = vmul.f32 %v255, 1.442695
  %v257 = vpow.pop %v256
  %v258 = vadd.f32 %v257, 1.0
  %v259 = vrcp.pop %v258
  %v260 = vmul.f32 1.0, %v259
  %v261 = vtanh.pop %v254
  %v262 = vmul.f32 %v260, 0.0
  %264 = vrot.lane.b32.xlu0 %v261, 64
  %v265 = vpop.permute.xlu0 %264
  %v267 = vmul.f32 %v260, %v265
  %269 = vrot.lane.b32.xlu0 %v267, 32
  %v270 = vpop.permute.xlu0 %269
  %v272 = vadd.f32 %v262, %v270
  %v273 = vtanh.pop %v272
  %275 = vrot.lane.b32.xlu0 %v273, 64
  %v276 = vpop.permute.xlu0 %275
  %v278 = vmul.f32 %v260, %v276
  %280 = vrot.lane.b32.xlu0 %v278, 32
  %v281 = vpop.permute.xlu0 %280
  %v282 = vsel %vm180, %v281, 0
  %284 = vmatprep.subr.mxu0 0.0
  %285 = vmatpush1.msra.mxu0 %v25
  %286 = vmatprep.subr.mxu0 0.0
  %287 = vmatpush1.msra.mxu0 %v26
  %288 = vmatprep.subr.mxu0 0.0
  %289 = vmatpush1.msra.mxu0 %v27
  %290 = vmatprep.subr.mxu0 0.0
  %291 = vmatpush1.msra.mxu0 %v28
  %292 = vmatprep.subr.mxu0 0.0
  %293 = vmatpush1.msra.mxu0 0.0
  %294 = vmatprep.subr.mxu0 0.0
  %295 = vmatpush1.msra.mxu0 0.0
  %296 = vmatprep.subr.mxu0 0.0
  %297 = vmatpush1.msra.mxu0 0.0
  %298 = vmatprep.subr.mxu0 0.0
  %299 = vmatpush1.msra.mxu0 0.0
  %300 = vmatprep.subr.mxu0 0.0
  %301 = vmatpush1.msra.mxu0 0.0
  %302 = vmatprep.subr.mxu0 0.0
  %303 = vmatpush1.msra.mxu0 0.0
  %304 = vmatprep.subr.mxu0 0.0
  %305 = vmatpush1.msra.mxu0 0.0
  %306 = vmatprep.subr.mxu0 0.0
  %307 = vmatpush1.msra.mxu0 0.0
  %308 = vmatprep.subr.mxu0 0.0
  %309 = vmatpush1.msra.mxu0 0.0
  %310 = vmatprep.subr.mxu0 0.0
  %311 = vmatpush1.msra.mxu0 0.0
  %312 = vmatprep.subr.mxu0 0.0
  %313 = vmatpush1.msra.mxu0 0.0
  %314 = vmatprep.subr.mxu0 0.0
  %315 = vmatpush1.msra.mxu0 0.0
  %316 = vmatprep.subr.mxu0 0.0
  %317 = vmatpush1.msra.mxu0 0.0
  %318 = vmatprep.subr.mxu0 0.0
  %319 = vmatpush1.msra.mxu0 0.0
  %320 = vmatprep.subr.mxu0 0.0
  %321 = vmatpush1.msra.mxu0 0.0
  %322 = vmatprep.subr.mxu0 0.0
  %323 = vmatpush1.msra.mxu0 0.0
  %324 = vmatprep.subr.mxu0 0.0
  %325 = vmatpush1.msra.mxu0 0.0
  %326 = vmatprep.subr.mxu0 0.0
  %327 = vmatpush1.msra.mxu0 0.0
  %328 = vmatprep.subr.mxu0 0.0
  %329 = vmatpush1.msra.mxu0 0.0
  %330 = vmatprep.subr.mxu0 0.0
  %331 = vmatpush1.msra.mxu0 0.0
  %332 = vmatprep.subr.mxu0 0.0
  %333 = vmatpush1.msra.mxu0 0.0
  %334 = vmatprep.subr.mxu0 0.0
  %335 = vmatpush1.msra.mxu0 0.0
  %336 = vmatprep.subr.mxu0 0.0
  %337 = vmatpush1.msra.mxu0 0.0
  %338 = vmatprep.subr.mxu0 0.0
  %339 = vmatpush1.msra.mxu0 0.0
  %340 = vmatprep.subr.mxu0 0.0
  %341 = vmatpush1.msra.mxu0 0.0
  %342 = vmatprep.subr.mxu0 0.0
  %343 = vmatpush1.msra.mxu0 0.0
  %344 = vmatprep.subr.mxu0 0.0
  %345 = vmatpush1.msra.mxu0 0.0
  %346 = vmatprep.subr.mxu0 0.0
  %347 = vmatpush1.msra.mxu0 0.0
  %348 = vmatprep.mubr.f32.mxu0 0.0
  %349 = vmatmul.mubr.f32.gmra.mrb[0].mxu0 %v282
  %v350 = vpop.f32.mrb[0].mxu0
  %v351 = vadd.f32 0.0, %v350
  %v352 = vpop.f32.mrb[0].mxu0
  %353 = vdwg.mxu0
  %v354 = vadd.f32 %v147, %v351
  %v355 = vxor.u32 %v354, 2147483648
  %v356 = vmul.f32 %v355, 1.442695
  %v357 = vpow.pop %v356
  %v358 = vadd.f32 %v357, 1.0
  %v359 = vrcp.pop %v358
  %v360 = vmul.f32 1.0, %v359
  %v361 = vtanh.pop %v354
  %v362 = vmul.f32 %v360, %v272
  %364 = vrot.lane.b32.xlu0 %v361, 64
  %v365 = vpop.permute.xlu0 %364
  %v367 = vmul.f32 %v360, %v365
  %369 = vrot.lane.b32.xlu0 %v367, 32
  %v370 = vpop.permute.xlu0 %369
  %v372 = vadd.f32 %v362, %v370
  %v373 = vtanh.pop %v372
  %375 = vrot.lane.b32.xlu0 %v373, 64
  %v376 = vpop.permute.xlu0 %375
  %v378 = vmul.f32 %v360, %v376
  %380 = vrot.lane.b32.xlu0 %v378, 32
  %v381 = vpop.permute.xlu0 %380
  %v382 = vsel %vm180, %v381, 0
  %384 = vmatprep.subr.mxu0 0.0
  %385 = vmatpush1.msra.mxu0 %v25
  %386 = vmatprep.subr.mxu0 0.0
  %387 = vmatpush1.msra.mxu0 %v26
  %388 = vmatprep.subr.mxu0 0.0
  %389 = vmatpush1.msra.mxu0 %v27
  %390 = vmatprep.subr.mxu0 0.0
  %391 = vmatpush1.msra.mxu0 %v28
  %392 = vmatprep.subr.mxu0 0.0
  %393 = vmatpush1.msra.mxu0 0.0
  %394 = vmatprep.subr.mxu0 0.0
  %395 = vmatpush1.msra.mxu0 0.0
  %396 = vmatprep.subr.mxu0 0.0
  %397 = vmatpush1.msra.mxu0 0.0
  %398 = vmatprep.subr.mxu0 0.0
  %399 = vmatpush1.msra.mxu0 0.0
  %400 = vmatprep.subr.mxu0 0.0
  %401 = vmatpush1.msra.mxu0 0.0
  %402 = vmatprep.subr.mxu0 0.0
  %403 = vmatpush1.msra.mxu0 0.0
  %404 = vmatprep.subr.mxu0 0.0
  %405 = vmatpush1.msra.mxu0 0.0
  %406 = vmatprep.subr.mxu0 0.0
  %407 = vmatpush1.msra.mxu0 0.0
  %408 = vmatprep.subr.mxu0 0.0
  %409 = vmatpush1.msra.mxu0 0.0
  %410 = vmatprep.subr.mxu0 0.0
  %411 = vmatpush1.msra.mxu0 0.0
  %412 = vmatprep.subr.mxu0 0.0
  %413 = vmatpush1.msra.mxu0 0.0
  %414 = vmatprep.subr.mxu0 0.0
  %415 = vmatpush1.msra.mxu0 0.0
  %416 = vmatprep.subr.mxu0 0.0
  %417 = vmatpush1.msra.mxu0 0.0
  %418 = vmatprep.subr.mxu0 0.0
  %419 = vmatpush1.msra.mxu0 0.0
  %420 = vmatprep.subr.mxu0 0.0
  %421 = vmatpush1.msra.mxu0 0.0
  %422 = vmatprep.subr.mxu0 0.0
  %423 = vmatpush1.msra.mxu0 0.0
  %424 = vmatprep.subr.mxu0 0.0
  %425 = vmatpush1.msra.mxu0 0.0
  %426 = vmatprep.subr.mxu0 0.0
  %427 = vmatpush1.msra.mxu0 0.0
  %428 = vmatprep.subr.mxu0 0.0
  %429 = vmatpush1.msra.mxu0 0.0
  %430 = vmatprep.subr.mxu0 0.0
  %431 = vmatpush1.msra.mxu0 0.0
  %432 = vmatprep.subr.mxu0 0.0
  %433 = vmatpush1.msra.mxu0 0.0
  %434 = vmatprep.subr.mxu0 0.0
  %435 = vmatpush1.msra.mxu0 0.0
  %436 = vmatprep.subr.mxu0 0.0
  %437 = vmatpush1.msra.mxu0 0.0
  %438 = vmatprep.subr.mxu0 0.0
  %439 = vmatpush1.msra.mxu0 0.0
  %440 = vmatprep.subr.mxu0 0.0
  %441 = vmatpush1.msra.mxu0 0.0
  %442 = vmatprep.subr.mxu0 0.0
  %443 = vmatpush1.msra.mxu0 0.0
  %444 = vmatprep.subr.mxu0 0.0
  %445 = vmatpush1.msra.mxu0 0.0
  %446 = vmatprep.subr.mxu0 0.0
  %447 = vmatpush1.msra.mxu0 0.0
  %448 = vmatprep.mubr.f32.mxu0 0.0
  %449 = vmatmul.mubr.f32.gmra.mrb[0].mxu0 %v382
  %v450 = vpop.f32.mrb[0].mxu0
  %v451 = vadd.f32 0.0, %v450
  %v452 = vpop.f32.mrb[0].mxu0
  %453 = vdwg.mxu0
  %v454 = vadd.f32 %v152, %v451
  %v455 = vxor.u32 %v454, 2147483648
  %v456 = vmul.f32 %v455, 1.442695
  %v457 = vpow.pop %v456
  %v458 = vadd.f32 %v457, 1.0
  %v459 = vrcp.pop %v458
  %v460 = vmul.f32 1.0, %v459
  %v461 = vtanh.pop %v454
  %v462 = vmul.f32 %v460, %v372
  %464 = vrot.lane.b32.xlu0 %v461, 64
  %v465 = vpop.permute.xlu0 %464
  %v467 = vmul.f32 %v460, %v465
  %469 = vrot.lane.b32.xlu0 %v467, 32
  %v470 = vpop.permute.xlu0 %469
  %v472 = vadd.f32 %v462, %v470
  %v473 = vtanh.pop %v472
  %475 = vrot.lane.b32.xlu0 %v473, 64
  %v476 = vpop.permute.xlu0 %475
  %v478 = vmul.f32 %v460, %v476
  %480 = vrot.lane.b32.xlu0 %v478, 32
  %v481 = vpop.permute.xlu0 %480
  %v482 = vsel %vm180, %v481, 0
  %484 = vmatprep.subr.mxu0 0.0
  %485 = vmatpush1.msra.mxu0 %v25
  %486 = vmatprep.subr.mxu0 0.0
  %487 = vmatpush1.msra.mxu0 %v26
  %488 = vmatprep.subr.mxu0 0.0
  %489 = vmatpush1.msra.mxu0 %v27
  %490 = vmatprep.subr.mxu0 0.0
  %491 = vmatpush1.msra.mxu0 %v28
  %492 = vmatprep.subr.mxu0 0.0
  %493 = vmatpush1.msra.mxu0 0.0
  %494 = vmatprep.subr.mxu0 0.0
  %495 = vmatpush1.msra.mxu0 0.0
  %496 = vmatprep.subr.mxu0 0.0
  %497 = vmatpush1.msra.mxu0 0.0
  %498 = vmatprep.subr.mxu0 0.0
  %499 = vmatpush1.msra.mxu0 0.0
  %500 = vmatprep.subr.mxu0 0.0
  %501 = vmatpush1.msra.mxu0 0.0
  %502 = vmatprep.subr.mxu0 0.0
  %503 = vmatpush1.msra.mxu0 0.0
  %504 = vmatprep.subr.mxu0 0.0
  %505 = vmatpush1.msra.mxu0 0.0
  %506 = vmatprep.subr.mxu0 0.0
  %507 = vmatpush1.msra.mxu0 0.0
  %508 = vmatprep.subr.mxu0 0.0
  %509 = vmatpush1.msra.mxu0 0.0
  %510 = vmatprep.subr.mxu0 0.0
  %511 = vmatpush1.msra.mxu0 0.0
  %512 = vmatprep.subr.mxu0 0.0
  %513 = vmatpush1.msra.mxu0 0.0
  %514 = vmatprep.subr.mxu0 0.0
  %515 = vmatpush1.msra.mxu0 0.0
  %516 = vmatprep.subr.mxu0 0.0
  %517 = vmatpush1.msra.mxu0 0.0
  %518 = vmatprep.subr.mxu0 0.0
  %519 = vmatpush1.msra.mxu0 0.0
  %520 = vmatprep.subr.mxu0 0.0
  %521 = vmatpush1.msra.mxu0 0.0
  %522 = vmatprep.subr.mxu0 0.0
  %523 = vmatpush1.msra.mxu0 0.0
  %524 = vmatprep.subr.mxu0 0.0
  %525 = vmatpush1.msra.mxu0 0.0
  %526 = vmatprep.subr.mxu0 0.0
  %527 = vmatpush1.msra.mxu0 0.0
  %528 = vmatprep.subr.mxu0 0.0
  %529 = vmatpush1.msra.mxu0 0.0
  %530 = vmatprep.subr.mxu0 0.0
  %531 = vmatpush1.msra.mxu0 0.0
  %532 = vmatprep.subr.mxu0 0.0
  %533 = vmatpush1.msra.mxu0 0.0
  %534 = vmatprep.subr.mxu0 0.0
  %535 = vmatpush1.msra.mxu0 0.0
  %536 = vmatprep.subr.mxu0 0.0
  %537 = vmatpush1.msra.mxu0 0.0
  %538 = vmatprep.subr.mxu0 0.0
  %539 = vmatpush1.msra.mxu0 0.0
  %540 = vmatprep.subr.mxu0 0.0
  %541 = vmatpush1.msra.mxu0 0.0
  %542 = vmatprep.subr.mxu0 0.0
  %543 = vmatpush1.msra.mxu0 0.0
  %544 = vmatprep.subr.mxu0 0.0
  %545 = vmatpush1.msra.mxu0 0.0
  %546 = vmatprep.subr.mxu0 0.0
  %547 = vmatpush1.msra.mxu0 0.0
  %548 = vmatprep.mubr.f32.mxu0 0.0
  %549 = vmatmul.mubr.f32.gmra.mrb[0].mxu0 %v482
  %v550 = vpop.f32.mrb[0].mxu0
  %v551 = vadd.f32 0.0, %v550
  %v552 = vpop.f32.mrb[0].mxu0
  %553 = vdwg.mxu0
  %v554 = vadd.f32 %v157, %v551
  %v555 = vxor.u32 %v554, 2147483648
  %v556 = vmul.f32 %v555, 1.442695
  %v557 = vpow.pop %v556
  %v558 = vadd.f32 %v557, 1.0
  %v559 = vrcp.pop %v558
  %v560 = vmul.f32 1.0, %v559
  %v561 = vtanh.pop %v554
  %v562 = vmul.f32 %v560, %v472
  %564 = vrot.lane.b32.xlu0 %v561, 64
  %v565 = vpop.permute.xlu0 %564
  %v567 = vmul.f32 %v560, %v565
  %569 = vrot.lane.b32.xlu0 %v567, 32
  %v570 = vpop.permute.xlu0 %569
  %v572 = vadd.f32 %v562, %v570
  %v573 = vtanh.pop %v572
  %575 = vrot.lane.b32.xlu0 %v573, 64
  %v576 = vpop.permute.xlu0 %575
  %v578 = vmul.f32 %v560, %v576
  %580 = vrot.lane.b32.xlu0 %v578, 32
  %v581 = vpop.permute.xlu0 %580
  %v582 = vsel %vm180, %v581, 0
  %584 = vmatprep.subr.mxu0 0.0
  %585 = vmatpush1.msra.mxu0 %v25
  %586 = vmatprep.subr.mxu0 0.0
  %587 = vmatpush1.msra.mxu0 %v26
  %588 = vmatprep.subr.mxu0 0.0
  %589 = vmatpush1.msra.mxu0 %v27
  %590 = vmatprep.subr.mxu0 0.0
  %591 = vmatpush1.msra.mxu0 %v28
  %592 = vmatprep.subr.mxu0 0.0
  %593 = vmatpush1.msra.mxu0 0.0
  %594 = vmatprep.subr.mxu0 0.0
  %595 = vmatpush1.msra.mxu0 0.0
  %596 = vmatprep.subr.mxu0 0.0
  %597 = vmatpush1.msra.mxu0 0.0
  %598 = vmatprep.subr.mxu0 0.0
  %599 = vmatpush1.msra.mxu0 0.0
  %600 = vmatprep.subr.mxu0 0.0
  %601 = vmatpush1.msra.mxu0 0.0
  %602 = vmatprep.subr.mxu0 0.0
  %603 = vmatpush1.msra.mxu0 0.0
  %604 = vmatprep.subr.mxu0 0.0
  %605 = vmatpush1.msra.mxu0 0.0
  %606 = vmatprep.subr.mxu0 0.0
  %607 = vmatpush1.msra.mxu0 0.0
  %608 = vmatprep.subr.mxu0 0.0
  %609 = vmatpush1.msra.mxu0 0.0
  %610 = vmatprep.subr.mxu0 0.0
  %611 = vmatpush1.msra.mxu0 0.0
  %612 = vmatprep.subr.mxu0 0.0
  %613 = vmatpush1.msra.mxu0 0.0
  %614 = vmatprep.subr.mxu0 0.0
  %615 = vmatpush1.msra.mxu0 0.0
  %616 = vmatprep.subr.mxu0 0.0
  %617 = vmatpush1.msra.mxu0 0.0
  %618 = vmatprep.subr.mxu0 0.0
  %619 = vmatpush1.msra.mxu0 0.0
  %620 = vmatprep.subr.mxu0 0.0
  %621 = vmatpush1.msra.mxu0 0.0
  %622 = vmatprep.subr.mxu0 0.0
  %623 = vmatpush1.msra.mxu0 0.0
  %624 = vmatprep.subr.mxu0 0.0
  %625 = vmatpush1.msra.mxu0 0.0
  %626 = vmatprep.subr.mxu0 0.0
  %627 = vmatpush1.msra.mxu0 0.0
  %628 = vmatprep.subr.mxu0 0.0
  %629 = vmatpush1.msra.mxu0 0.0
  %630 = vmatprep.subr.mxu0 0.0
  %631 = vmatpush1.msra.mxu0 0.0
  %632 = vmatprep.subr.mxu0 0.0
  %633 = vmatpush1.msra.mxu0 0.0
  %634 = vmatprep.subr.mxu0 0.0
  %635 = vmatpush1.msra.mxu0 0.0
  %636 = vmatprep.subr.mxu0 0.0
  %637 = vmatpush1.msra.mxu0 0.0
  %638 = vmatprep.subr.mxu0 0.0
  %639 = vmatpush1.msra.mxu0 0.0
  %640 = vmatprep.subr.mxu0 0.0
  %641 = vmatpush1.msra.mxu0 0.0
  %642 = vmatprep.subr.mxu0 0.0
  %643 = vmatpush1.msra.mxu0 0.0
  %644 = vmatprep.subr.mxu0 0.0
  %645 = vmatpush1.msra.mxu0 0.0
  %646 = vmatprep.subr.mxu0 0.0
  %647 = vmatpush1.msra.mxu0 0.0
  %648 = vmatprep.mubr.f32.mxu0 0.0
  %649 = vmatmul.mubr.f32.gmra.mrb[0].mxu0 %v582
  %v650 = vpop.f32.mrb[0].mxu0
  %v651 = vadd.f32 0.0, %v650
  %v652 = vpop.f32.mrb[0].mxu0
  %653 = vdwg.mxu0
  %v654 = vadd.f32 %v162, %v651
  %v655 = vxor.u32 %v654, 2147483648
  %v656 = vmul.f32 %v655, 1.442695
  %v657 = vpow.pop %v656
  %v658 = vadd.f32 %v657, 1.0
  %v659 = vrcp.pop %v658
  %v660 = vmul.f32 1.0, %v659
  %v661 = vtanh.pop %v654
  %v662 = vmul.f32 %v660, %v572
  %664 = vrot.lane.b32.xlu0 %v661, 64
  %v665 = vpop.permute.xlu0 %664
  %v667 = vmul.f32 %v660, %v665
  %669 = vrot.lane.b32.xlu0 %v667, 32
  %v670 = vpop.permute.xlu0 %669
  %v672 = vadd.f32 %v662, %v670
  %v673 = vtanh.pop %v672
  %675 = vrot.lane.b32.xlu0 %v673, 64
  %v676 = vpop.permute.xlu0 %675
  %v678 = vmul.f32 %v660, %v676
  %680 = vrot.lane.b32.xlu0 %v678, 32
  %v681 = vpop.permute.xlu0 %680
  %v682 = vsel %vm180, %v681, 0
  %684 = vmatprep.subr.mxu0 0.0
  %685 = vmatpush1.msra.mxu0 %v25
  %686 = vmatprep.subr.mxu0 0.0
  %687 = vmatpush1.msra.mxu0 %v26
  %688 = vmatprep.subr.mxu0 0.0
  %689 = vmatpush1.msra.mxu0 %v27
  %690 = vmatprep.subr.mxu0 0.0
  %691 = vmatpush1.msra.mxu0 %v28
  %692 = vmatprep.subr.mxu0 0.0
  %693 = vmatpush1.msra.mxu0 0.0
  %694 = vmatprep.subr.mxu0 0.0
  %695 = vmatpush1.msra.mxu0 0.0
  %696 = vmatprep.subr.mxu0 0.0
  %697 = vmatpush1.msra.mxu0 0.0
  %698 = vmatprep.subr.mxu0 0.0
  %699 = vmatpush1.msra.mxu0 0.0
  %700 = vmatprep.subr.mxu0 0.0
  %701 = vmatpush1.msra.mxu0 0.0
  %702 = vmatprep.subr.mxu0 0.0
  %703 = vmatpush1.msra.mxu0 0.0
  %704 = vmatprep.subr.mxu0 0.0
  %705 = vmatpush1.msra.mxu0 0.0
  %706 = vmatprep.subr.mxu0 0.0
  %707 = vmatpush1.msra.mxu0 0.0
  %708 = vmatprep.subr.mxu0 0.0
  %709 = vmatpush1.msra.mxu0 0.0
  %710 = vmatprep.subr.mxu0 0.0
  %711 = vmatpush1.msra.mxu0 0.0
  %712 = vmatprep.subr.mxu0 0.0
  %713 = vmatpush1.msra.mxu0 0.0
  %714 = vmatprep.subr.mxu0 0.0
  %715 = vmatpush1.msra.mxu0 0.0
  %716 = vmatprep.subr.mxu0 0.0
  %717 = vmatpush1.msra.mxu0 0.0
  %718 = vmatprep.subr.mxu0 0.0
  %719 = vmatpush1.msra.mxu0 0.0
  %720 = vmatprep.subr.mxu0 0.0
  %721 = vmatpush1.msra.mxu0 0.0
  %722 = vmatprep.subr.mxu0 0.0
  %723 = vmatpush1.msra.mxu0 0.0
  %724 = vmatprep.subr.mxu0 0.0
  %725 = vmatpush1.msra.mxu0 0.0
  %726 = vmatprep.subr.mxu0 0.0
  %727 = vmatpush1.msra.mxu0 0.0
  %728 = vmatprep.subr.mxu0 0.0
  %729 = vmatpush1.msra.mxu0 0.0
  %730 = vmatprep.subr.mxu0 0.0
  %731 = vmatpush1.msra.mxu0 0.0
  %732 = vmatprep.subr.mxu0 0.0
  %733 = vmatpush1.msra.mxu0 0.0
  %734 = vmatprep.subr.mxu0 0.0
  %735 = vmatpush1.msra.mxu0 0.0
  %736 = vmatprep.subr.mxu0 0.0
  %737 = vmatpush1.msra.mxu0 0.0
  %738 = vmatprep.subr.mxu0 0.0
  %739 = vmatpush1.msra.mxu0 0.0
  %740 = vmatprep.subr.mxu0 0.0
  %741 = vmatpush1.msra.mxu0 0.0
  %742 = vmatprep.subr.mxu0 0.0
  %743 = vmatpush1.msra.mxu0 0.0
  %744 = vmatprep.subr.mxu0 0.0
  %745 = vmatpush1.msra.mxu0 0.0
  %746 = vmatprep.subr.mxu0 0.0
  %747 = vmatpush1.msra.mxu0 0.0
  %748 = vmatprep.mubr.f32.mxu0 0.0
  %749 = vmatmul.mubr.f32.gmra.mrb[0].mxu0 %v682
  %v750 = vpop.f32.mrb[0].mxu0
  %v751 = vadd.f32 0.0, %v750
  %v752 = vpop.f32.mrb[0].mxu0
  %753 = vdwg.mxu0
  %v754 = vadd.f32 %v167, %v751
  %v755 = vxor.u32 %v754, 2147483648
  %v756 = vmul.f32 %v755, 1.442695
  %v757 = vpow.pop %v756
  %v758 = vadd.f32 %v757, 1.0
  %v759 = vrcp.pop %v758
  %v760 = vmul.f32 1.0, %v759
  %v761 = vtanh.pop %v754
  %v762 = vmul.f32 %v760, %v672
  %764 = vrot.lane.b32.xlu0 %v761, 64
  %v765 = vpop.permute.xlu0 %764
  %v767 = vmul.f32 %v760, %v765
  %769 = vrot.lane.b32.xlu0 %v767, 32
  %v770 = vpop.permute.xlu0 %769
  %v772 = vadd.f32 %v762, %v770
  %v773 = vtanh.pop %v772
  %775 = vrot.lane.b32.xlu0 %v773, 64
  %v776 = vpop.permute.xlu0 %775
  %v778 = vmul.f32 %v760, %v776
  %780 = vrot.lane.b32.xlu0 %v778, 32
  %v781 = vpop.permute.xlu0 %780
  %v782 = vsel %vm180, %v781, 0
  %784 = vmatprep.subr.mxu0 0.0
  %785 = vmatpush1.msra.mxu0 %v25
  %786 = vmatprep.subr.mxu0 0.0
  %787 = vmatpush1.msra.mxu0 %v26
  %788 = vmatprep.subr.mxu0 0.0
  %789 = vmatpush1.msra.mxu0 %v27
  %790 = vmatprep.subr.mxu0 0.0
  %791 = vmatpush1.msra.mxu0 %v28
  %792 = vmatprep.subr.mxu0 0.0
  %793 = vmatpush1.msra.mxu0 0.0
  %794 = vmatprep.subr.mxu0 0.0
  %795 = vmatpush1.msra.mxu0 0.0
  %796 = vmatprep.subr.mxu0 0.0
  %797 = vmatpush1.msra.mxu0 0.0
  %798 = vmatprep.subr.mxu0 0.0
  %799 = vmatpush1.msra.mxu0 0.0
  %800 = vmatprep.subr.mxu0 0.0
  %801 = vmatpush1.msra.mxu0 0.0
  %802 = vmatprep.subr.mxu0 0.0
  %803 = vmatpush1.msra.mxu0 0.0
  %804 = vmatprep.subr.mxu0 0.0
  %805 = vmatpush1.msra.mxu0 0.0
  %806 = vmatprep.subr.mxu0 0.0
  %807 = vmatpush1.msra.mxu0 0.0
  %808 = vmatprep.subr.mxu0 0.0
  %809 = vmatpush1.msra.mxu0 0.0
  %810 = vmatprep.subr.mxu0 0.0
  %811 = vmatpush1.msra.mxu0 0.0
  %812 = vmatprep.subr.mxu0 0.0
  %813 = vmatpush1.msra.mxu0 0.0
  %814 = vmatprep.subr.mxu0 0.0
  %815 = vmatpush1.msra.mxu0 0.0
  %816 = vmatprep.subr.mxu0 0.0
  %817 = vmatpush1.msra.mxu0 0.0
  %818 = vmatprep.subr.mxu0 0.0
  %819 = vmatpush1.msra.mxu0 0.0
  %820 = vmatprep.subr.mxu0 0.0
  %821 = vmatpush1.msra.mxu0 0.0
  %822 = vmatprep.subr.mxu0 0.0
  %823 = vmatpush1.msra.mxu0 0.0
  %824 = vmatprep.subr.mxu0 0.0
  %825 = vmatpush1.msra.mxu0 0.0
  %826 = vmatprep.subr.mxu0 0.0
  %827 = vmatpush1.msra.mxu0 0.0
  %828 = vmatprep.subr.mxu0 0.0
  %829 = vmatpush1.msra.mxu0 0.0
  %830 = vmatprep.subr.mxu0 0.0
  %831 = vmatpush1.msra.mxu0 0.0
  %832 = vmatprep.subr.mxu0 0.0
  %833 = vmatpush1.msra.mxu0 0.0
  %834 = vmatprep.subr.mxu0 0.0
  %835 = vmatpush1.msra.mxu0 0.0
  %836 = vmatprep.subr.mxu0 0.0
  %837 = vmatpush1.msra.mxu0 0.0
  %838 = vmatprep.subr.mxu0 0.0
  %839 = vmatpush1.msra.mxu0 0.0
  %840 = vmatprep.subr.mxu0 0.0
  %841 = vmatpush1.msra.mxu0 0.0
  %842 = vmatprep.subr.mxu0 0.0
  %843 = vmatpush1.msra.mxu0 0.0
  %844 = vmatprep.subr.mxu0 0.0
  %845 = vmatpush1.msra.mxu0 0.0
  %846 = vmatprep.subr.mxu0 0.0
  %847 = vmatpush1.msra.mxu0 0.0
  %848 = vmatprep.mubr.f32.mxu0 0.0
  %849 = vmatmul.mubr.f32.gmra.mrb[0].mxu0 %v782
  %v850 = vpop.f32.mrb[0].mxu0
  %v851 = vadd.f32 0.0, %v850
  %v852 = vpop.f32.mrb[0].mxu0
  %853 = vdwg.mxu0
  %v854 = vadd.f32 %v172, %v851
  %v855 = vxor.u32 %v854, 2147483648
  %v856 = vmul.f32 %v855, 1.442695
  %v857 = vpow.pop %v856
  %v858 = vadd.f32 %v857, 1.0
  %v859 = vrcp.pop %v858
  %v860 = vmul.f32 1.0, %v859
  %v861 = vtanh.pop %v854
  %v862 = vmul.f32 %v860, %v772
  %864 = vrot.lane.b32.xlu0 %v861, 64
  %v865 = vpop.permute.xlu0 %864
  %v867 = vmul.f32 %v860, %v865
  %869 = vrot.lane.b32.xlu0 %v867, 32
  %v870 = vpop.permute.xlu0 %869
  %v872 = vadd.f32 %v862, %v870
  %v873 = vtanh.pop %v872
  %875 = vrot.lane.b32.xlu0 %v873, 64
  %v876 = vpop.permute.xlu0 %875
  %v878 = vmul.f32 %v860, %v876
  %880 = vrot.lane.b32.xlu0 %v878, 32
  %v881 = vpop.permute.xlu0 %880
  %v882 = vsel %vm180, %v881, 0
  %884 = vmatprep.subr.mxu0 0.0
  %885 = vmatpush1.msra.mxu0 %v25
  %886 = vmatprep.subr.mxu0 0.0
  %887 = vmatpush1.msra.mxu0 %v26
  %888 = vmatprep.subr.mxu0 0.0
  %889 = vmatpush1.msra.mxu0 %v27
  %890 = vmatprep.subr.mxu0 0.0
  %891 = vmatpush1.msra.mxu0 %v28
  %892 = vmatprep.subr.mxu0 0.0
  %893 = vmatpush1.msra.mxu0 0.0
  %894 = vmatprep.subr.mxu0 0.0
  %895 = vmatpush1.msra.mxu0 0.0
  %896 = vmatprep.subr.mxu0 0.0
  %897 = vmatpush1.msra.mxu0 0.0
  %898 = vmatprep.subr.mxu0 0.0
  %899 = vmatpush1.msra.mxu0 0.0
  %900 = vmatprep.subr.mxu0 0.0
  %901 = vmatpush1.msra.mxu0 0.0
  %902 = vmatprep.subr.mxu0 0.0
  %903 = vmatpush1.msra.mxu0 0.0
  %904 = vmatprep.subr.mxu0 0.0
  %905 = vmatpush1.msra.mxu0 0.0
  %906 = vmatprep.subr.mxu0 0.0
  %907 = vmatpush1.msra.mxu0 0.0
  %908 = vmatprep.subr.mxu0 0.0
  %909 = vmatpush1.msra.mxu0 0.0
  %910 = vmatprep.subr.mxu0 0.0
  %911 = vmatpush1.msra.mxu0 0.0
  %912 = vmatprep.subr.mxu0 0.0
  %913 = vmatpush1.msra.mxu0 0.0
  %914 = vmatprep.subr.mxu0 0.0
  %915 = vmatpush1.msra.mxu0 0.0
  %916 = vmatprep.subr.mxu0 0.0
  %917 = vmatpush1.msra.mxu0 0.0
  %918 = vmatprep.subr.mxu0 0.0
  %919 = vmatpush1.msra.mxu0 0.0
  %920 = vmatprep.subr.mxu0 0.0
  %921 = vmatpush1.msra.mxu0 0.0
  %922 = vmatprep.subr.mxu0 0.0
  %923 = vmatpush1.msra.mxu0 0.0
  %924 = vmatprep.subr.mxu0 0.0
  %925 = vmatpush1.msra.mxu0 0.0
  %926 = vmatprep.subr.mxu0 0.0
  %927 = vmatpush1.msra.mxu0 0.0
  %928 = vmatprep.subr.mxu0 0.0
  %929 = vmatpush1.msra.mxu0 0.0
  %930 = vmatprep.subr.mxu0 0.0
  %931 = vmatpush1.msra.mxu0 0.0
  %932 = vmatprep.subr.mxu0 0.0
  %933 = vmatpush1.msra.mxu0 0.0
  %934 = vmatprep.subr.mxu0 0.0
  %935 = vmatpush1.msra.mxu0 0.0
  %936 = vmatprep.subr.mxu0 0.0
  %937 = vmatpush1.msra.mxu0 0.0
  %938 = vmatprep.subr.mxu0 0.0
  %939 = vmatpush1.msra.mxu0 0.0
  %940 = vmatprep.subr.mxu0 0.0
  %941 = vmatpush1.msra.mxu0 0.0
  %942 = vmatprep.subr.mxu0 0.0
  %943 = vmatpush1.msra.mxu0 0.0
  %944 = vmatprep.subr.mxu0 0.0
  %945 = vmatpush1.msra.mxu0 0.0
  %946 = vmatprep.subr.mxu0 0.0
  %947 = vmatpush1.msra.mxu0 0.0
  %948 = vmatprep.mubr.f32.mxu0 0.0
  %949 = vmatmul.mubr.f32.gmra.mrb[0].mxu0 %v882
  %v950 = vpop.f32.mrb[0].mxu0
  %v951 = vadd.f32 0.0, %v950
  %v952 = vpop.f32.mrb[0].mxu0
  %953 = vdwg.mxu0
  %v954 = vadd.f32 %v177, %v951
  %v955 = vxor.u32 %v954, 2147483648
  %v956 = vmul.f32 %v955, 1.442695
  %v957 = vpow.pop %v956
  %v958 = vadd.f32 %v957, 1.0
  %v959 = vrcp.pop %v958
  %v960 = vmul.f32 1.0, %v959
  %v961 = vtanh.pop %v954
  %v962 = vmul.f32 %v960, %v872
  %964 = vrot.lane.b32.xlu0 %v961, 64
  %v965 = vpop.permute.xlu0 %964
  %v967 = vmul.f32 %v960, %v965
  %969 = vrot.lane.b32.xlu0 %v967, 32
  %v970 = vpop.permute.xlu0 %969
  %v972 = vadd.f32 %v962, %v970
  %v973 = vtanh.pop %v972
  %975 = vrot.lane.b32.xlu0 %v973, 64
  %v976 = vpop.permute.xlu0 %975
  %v978 = vmul.f32 %v960, %v976
  %v979 = vmax.f32 %v978, 0.0
  %v981 = vlaneseq
  %v982 = vshrl.u32 %v981, 7
  %v983 = vsub.s32 0, %v982
  %v984 = vrot.slane %v29, %v983
  %985 = vrot.lane.b32.xlu0 %v984, 96
  %v986 = vpop.permute.xlu0 %985
  %v988 = vmul.f32 %v979, %v986
  %990 = vrot.lane.b32.xlu0 %v988, 32
  %v991 = vpop.permute.xlu0 %990
  %v993 = vsel %vm180, %v991, 0.0
  %994 = vadd.xlane.f32.xlu0 %v993
  %v995 = vpop.xlane.xlu0 %994
  %v996 = vld [vmem:[#allocation2] sm:$0x1]
  %v998 = vlaneseq
  %v999 = vshrl.u32 %v998, 7
  %v1000 = vsub.s32 0, %v999
  %v1001 = vrot.slane %v996, %v1000
  %v1003 = vadd.f32 %v995, %v1001
  %vm1004 = vcmask 7168
  %1005 = vst.msk [vmem:[%s6] sm:$0xff] %vm1004, %v1003
  // Predicated region
  $region26: #{tpu_custom_call.1} parent=0 // pred_check
    _
  $region27: #{tpu_custom_call.1} parent=0 // pred_check_branch
    %1007 = sbr.rel (0) target = $region29
  $region28: #{tpu_custom_call.1} parent=0 // pred_region
    _
  $region29: #{tpu_custom_call.1} parent=0 // pred_fallthru
    _
  // Predicated region
  $region30: #{tpu_custom_call.1} parent=0 // pred_check
    _
  $region31: #{tpu_custom_call.1} parent=0 // pred_check_branch
    %1009 = sbr.rel (0) target = $region33
  $region32: #{tpu_custom_call.1} parent=0 // pred_region
    _
  $region33: #{tpu_custom_call.1} parent=0 // pred_fallthru
    _

</llo_original>
